<compile_context>
chip_gen: v7x
topology: tpu7x:2x2x1
jax: 0.10.0
libtpu: 0.0.40
codegen_flags: <defaults>
</compile_context>

<pallas_src>
import functools
import math

import jax
import jax.numpy as jnp
from jax import lax
from jax.experimental import pallas as pl
from jax.experimental.pallas import tpu as pltpu  # noqa: F401  (TPU-targeted build)

EMBEDDING_DIM = 2
ATTENTION_DIM = 3
NEG_LARGE = -1.0e30  # finite "masked" value: no inf arithmetic, no NaN on masked rows


def _attn_kernel(x_ref, w_ref, o_ref, *, batch, seq, emb, att):
    # x_ref : (B*T, E)    flattened activations
    # w_ref : (E, E+A)    [ Wq^T @ Wk / sqrt(A) | Wv^T ]  (folded, coalesced operand)
    # o_ref : (B*T, A)
    x = x_ref[...]
    w = w_ref[...]
    n = batch * seq

    # Fused projection of all B*T rows via VPU broadcast-MAC over the tiny E
    # contraction (avoids MXU push + result-FIFO pop for a K=E matmul).
    proj = x[:, 0:1] * w[0:1, :]
    for e in range(1, emb):
        proj = proj + x[:, e:e + 1] * w[e:e + 1, :]
    xm_all = proj[:, :emb]          # (B*T, E) == x @ (Wq^T Wk / sqrt(A))
    v_all = proj[:, emb:]           # (B*T, A) == x @ Wv^T

    # One merged (B*T, B*T) scores matrix: scores[i, j] = q_i . k_j / sqrt(A).
    # dot_general contracts the last dims directly -> no transpose/relayout.
    scores = lax.dot_general(
        xm_all, x, (((1,), (1,)), ((), ())),
        preferred_element_type=jnp.float32)                     # (B*T, B*T)

    # Combined causal + block-diagonal additive mask (mask cross-batch entries
    # so softmax never mixes tokens across batches).
    r = lax.broadcasted_iota(jnp.int32, (n, n), 0)
    c = lax.broadcasted_iota(jnp.int32, (n, n), 1)
    log2_seq = seq.bit_length() - 1
    if (1 << log2_seq) == seq:          # power-of-two T: pure bit-shift batch ids
        same_batch = (r >> log2_seq) == (c >> log2_seq)
    else:
        same_batch = (r // seq) == (c // seq)
    ok = jnp.logical_and(same_batch, c <= r)
    scores = scores + jnp.where(ok, jnp.float32(0.0), jnp.float32(NEG_LARGE))

    # Softmax (every row has at least its diagonal unmasked).
    m_row = jnp.max(scores, axis=-1, keepdims=True)
    p = jnp.exp(scores - m_row)
    attn = p / jnp.sum(p, axis=-1, keepdims=True)

    out = jnp.dot(attn, v_all, preferred_element_type=jnp.float32)  # (B*T, A)
    # torch.round(output, decimals=4); single contiguous store.
    o_ref[...] = jnp.round(out * 1.0e4) * 1.0e-4


def _single_head_attention_impl(embedded, w_key, w_query, w_value):
    """embedded: [B, T, E] float32; w_*: [A, E] (nn.Linear weight layout)."""
    B, T, E = embedded.shape
    A = w_key.shape[0]
    n = B * T

    x2 = embedded.astype(jnp.float32).reshape(n, E)
    scale = 1.0 / math.sqrt(A)
    # Fold Wq^T @ Wk and the 1/sqrt(A) scale, concat with Wv^T -> one operand.
    m_qk = (w_query.astype(jnp.float32).T @ w_key.astype(jnp.float32)) * scale  # (E, E)
    wv_t = w_value.astype(jnp.float32).T                                        # (E, A)
    w_comb = jnp.concatenate([m_qk, wv_t], axis=1)                              # (E, E+A)

    flops = 2 * n * E * (E + A) + 2 * n * n * E + 2 * n * n * A + 4 * n * n
    bytes_accessed = 4 * (n * E + E * (E + A) + n * A)

    kernel = functools.partial(_attn_kernel, batch=B, seq=T, emb=E, att=A)
    out2 = pl.pallas_call(
        kernel,
        out_shape=jax.ShapeDtypeStruct((n, A), jnp.float32),
        # No grid: single invocation, blocks cover the whole (tiny) arrays.
        in_specs=[
            pl.BlockSpec((n, E), lambda: (0, 0)),
            pl.BlockSpec((E, E + A), lambda: (0, 0)),
        ],
        out_specs=pl.BlockSpec((n, A), lambda: (0, 0)),
        cost_estimate=pl.CostEstimate(
            flops=flops, transcendentals=n * n,
            bytes_accessed=bytes_accessed),
    )(x2, w_comb)
    return out2.reshape(B, T, A)


# Jit the whole path so the constant folding / reshape are not eager dispatches.
single_head_attention = jax.jit(_single_head_attention_impl)


def _reference(embedded, w_key, w_query, w_value):
    """Pure-JAX mirror of the PyTorch forward pass (for verification)."""
    A = w_key.shape[0]
    k = embedded @ w_key.T
    q = embedded @ w_query.T
    v = embedded @ w_value.T
    scores = (q @ jnp.swapaxes(k, 1, 2)) / (A ** 0.5)
    T = embedded.shape[1]
    mask = ~jnp.tril(jnp.ones((T, T), dtype=bool))
    scores = jnp.where(mask[None, :, :], -jnp.inf, scores)
    attn = jax.nn.softmax(scores, axis=2)
    return jnp.round(attn @ v, 4)


if __name__ == "__main__":
    B, T, E, A = 2, 8, EMBEDDING_DIM, ATTENTION_DIM

    root = jax.random.PRNGKey(0)
    k_x, k_k, k_q, k_v = jax.random.split(root, 4)

    # Deterministic synthetic inputs / parameters (nn.Linear-style uniform init).
    embedded = jax.random.normal(k_x, (B, T, E), dtype=jnp.float32)
    bound = 1.0 / (E ** 0.5)
    w_key = jax.random.uniform(k_k, (A, E), jnp.float32, -bound, bound)
    w_query = jax.random.uniform(k_q, (A, E), jnp.float32, -bound, bound)
    w_value = jax.random.uniform(k_v, (A, E), jnp.float32, -bound, bound)

    out = single_head_attention(embedded, w_key, w_query, w_value)
    out = jax.block_until_ready(out)

    ref = _reference(embedded, w_key, w_query, w_value)
    assert out.shape == (B, T, A), out.shape
    assert jnp.allclose(out, ref, atol=1e-4, rtol=1e-4), (out, ref)

    print("KERNEL_OK")
</pallas_src>

<mosaic_0001>
module attributes {stable_mosaic.version = 11 : i64} {
  func.func @_attn_kernel(%arg0: memref<16x2xf32, #tpu.memory_space<vmem>>, %arg1: memref<2x5xf32, #tpu.memory_space<vmem>>, %arg2: memref<16x3xf32, #tpu.memory_space<vmem>>) attributes {dimension_semantics = [], scalar_prefetch = 0 : i64, scratch_operands = 0 : i64, tpu.core_type = #tpu.core_type<tc>} {
    %c0 = arith.constant 0 : index
    %c0_0 = arith.constant 0 : index
    %0 = vector.load %arg0[%c0, %c0_0] : memref<16x2xf32, #tpu.memory_space<vmem>>, vector<16x2xf32>
    %c0_1 = arith.constant 0 : index
    %c0_2 = arith.constant 0 : index
    %1 = vector.load %arg1[%c0_1, %c0_2] : memref<2x5xf32, #tpu.memory_space<vmem>>, vector<2x5xf32>
    %2 = vector.extract_strided_slice %0 {offsets = [0, 0], sizes = [16, 1], strides = [1, 1]} : vector<16x2xf32> to vector<16x1xf32>
    %3 = vector.extract_strided_slice %1 {offsets = [0, 0], sizes = [1, 5], strides = [1, 1]} : vector<2x5xf32> to vector<1x5xf32>
    %4 = vector.broadcast %2 : vector<16x1xf32> to vector<16x5xf32>
    %5 = vector.broadcast %3 : vector<1x5xf32> to vector<16x5xf32>
    %6 = arith.mulf %4, %5 : vector<16x5xf32>
    %7 = vector.extract_strided_slice %0 {offsets = [0, 1], sizes = [16, 1], strides = [1, 1]} : vector<16x2xf32> to vector<16x1xf32>
    %8 = vector.extract_strided_slice %1 {offsets = [1, 0], sizes = [1, 5], strides = [1, 1]} : vector<2x5xf32> to vector<1x5xf32>
    %9 = vector.broadcast %7 : vector<16x1xf32> to vector<16x5xf32>
    %10 = vector.broadcast %8 : vector<1x5xf32> to vector<16x5xf32>
    %11 = arith.mulf %9, %10 : vector<16x5xf32>
    %12 = arith.addf %6, %11 : vector<16x5xf32>
    %13 = vector.extract_strided_slice %12 {offsets = [0, 0], sizes = [16, 2], strides = [1, 1]} : vector<16x5xf32> to vector<16x2xf32>
    %14 = vector.extract_strided_slice %12 {offsets = [0, 2], sizes = [16, 3], strides = [1, 1]} : vector<16x5xf32> to vector<16x3xf32>
    %cst = arith.constant dense<0.000000e+00> : vector<16x16xf32>
    %15 = tpu.matmul %13, %0, %cst {dimension_numbers = #tpu.dot_dimension_numbers<[1], [1], [0], [0], [0, 0, 1, 0], [], []>} : vector<16x2xf32>, vector<16x2xf32>, vector<16x16xf32> -> vector<16x16xf32>
    %16 = tpu.iota {dimensions = array<i32: 0>} : vector<16x16xi32>
    %17 = tpu.iota {dimensions = array<i32: 1>} : vector<16x16xi32>
    %c3_i32 = arith.constant 3 : i32
    %18 = vector.broadcast %c3_i32 : i32 to vector<16x16xi32>
    %19 = arith.shrsi %16, %18 : vector<16x16xi32>
    %c3_i32_3 = arith.constant 3 : i32
    %20 = vector.broadcast %c3_i32_3 : i32 to vector<16x16xi32>
    %21 = arith.shrsi %17, %20 : vector<16x16xi32>
    %22 = arith.cmpi eq, %19, %21 : vector<16x16xi32>
    %23 = arith.cmpi sle, %17, %16 : vector<16x16xi32>
    %24 = arith.andi %22, %23 : vector<16x16xi1>
    %cst_4 = arith.constant 0.000000e+00 : f32
    %cst_5 = arith.constant -1.000000e+30 : f32
    %25 = vector.broadcast %cst_4 : f32 to vector<16x16xf32>
    %26 = vector.broadcast %cst_5 : f32 to vector<16x16xf32>
    %27 = arith.select %24, %25, %26 : vector<16x16xi1>, vector<16x16xf32>
    %28 = arith.addf %15, %27 : vector<16x16xf32>
    %cst_6 = arith.constant dense<0xFF800000> : vector<16xf32>
    %29 = vector.multi_reduction <maximumf>, %28, %cst_6 [1] : vector<16x16xf32> to vector<16xf32>
    %30 = vector.shape_cast %29 : vector<16xf32> to vector<16x1xf32>
    %31 = vector.broadcast %30 : vector<16x1xf32> to vector<16x16xf32>
    %32 = arith.subf %28, %31 : vector<16x16xf32>
    %33 = math.exp %32 : vector<16x16xf32>
    %cst_7 = arith.constant dense<0.000000e+00> : vector<16xf32>
    %34 = vector.multi_reduction <add>, %33, %cst_7 [1] : vector<16x16xf32> to vector<16xf32>
    %35 = vector.shape_cast %34 : vector<16xf32> to vector<16x1xf32>
    %36 = vector.broadcast %35 : vector<16x1xf32> to vector<16x16xf32>
    %37 = arith.divf %33, %36 : vector<16x16xf32>
    %cst_8 = arith.constant dense<0.000000e+00> : vector<16x3xf32>
    %38 = tpu.matmul %37, %14, %cst_8 {dimension_numbers = #tpu.dot_dimension_numbers<[1], [0], [0], [1], [0, 0, 1, 1], [], []>} : vector<16x16xf32>, vector<16x3xf32>, vector<16x3xf32> -> vector<16x3xf32>
    %cst_9 = arith.constant 1.000000e+04 : f32
    %39 = vector.broadcast %cst_9 : f32 to vector<16x3xf32>
    %40 = arith.mulf %38, %39 : vector<16x3xf32>
    %41 = math.roundeven %40 : vector<16x3xf32>
    %cst_10 = arith.constant 9.99999974E-5 : f32
    %42 = vector.broadcast %cst_10 : f32 to vector<16x3xf32>
    %43 = arith.mulf %41, %42 : vector<16x3xf32>
    %c0_11 = arith.constant 0 : index
    %c0_12 = arith.constant 0 : index
    %44 = vector.load %arg2[%c0_11, %c0_12] : memref<16x3xf32, #tpu.memory_space<vmem>>, vector<16x3xf32>
    tpu.vector_store %arg2[%c0_11, %c0_12], %43 {strides = array<i32>} : memref<16x3xf32, #tpu.memory_space<vmem>>, vector<16x3xf32>,
    return
  }
}

</mosaic_0001>

<llo_original>
// kernel: _single_head_attention_impl.1
$region0: #{_single_head_attention_impl.1}
  #allocation0 [shape = 'u32[]', space=smem, size = 0x4, offset = 0x4, fixed_abs, tag = 'smem constant byte address 0x4 - core index']
  #allocation1 [shape = 'u32[144,128]{1,0:T(1,128)}', space=vmem, size = 0x12000, scoped, tag = 'internal scratch']
  %s0 = inlined_call_operand.vmem [shape: f32[16,2], index: 0, kind: input, shape index: {}]
  %s1 = inlined_call_operand.vmem [shape: f32[2,5], index: 1, kind: input, shape index: {}]
  %s2 = inlined_call_operand.vmem [shape: f32[16,3], index: 2, kind: output, shape index: {}]
  %s3 = sld [smem:[#allocation0]]
  $region18: #{_single_head_attention_impl.1} parent=0
    _
  %s5 = ssub.s32 1, %s3
  %s6 = scalar_select 0, %s5, %s3
  // Predicated region
  $region2: #{_single_head_attention_impl.1} parent=0 // pred_check
    _
  $region3: #{_single_head_attention_impl.1} parent=0 // pred_check_branch
    %8 = sbr.rel (0) target = $region5
  $region4: #{_single_head_attention_impl.1} parent=0 // pred_region
    _
  $region5: #{_single_head_attention_impl.1} parent=0 // pred_fallthru
    _
  // Predicated region
  $region6: #{_single_head_attention_impl.1} parent=0 // pred_check
    _
  $region7: #{_single_head_attention_impl.1} parent=0 // pred_check_branch
    %10 = sbr.rel (0) target = $region9
  $region8: #{_single_head_attention_impl.1} parent=0 // pred_region
    _
  $region9: #{_single_head_attention_impl.1} parent=0 // pred_fallthru
    _
  %v11 = vld [vmem:[%s0] sm:$0xff]
  %v12 = vld [vmem:[%s0 + $0x8] sm:$0xff]
  %v13 = vld [vmem:[%s1] sm:$0x3]
  %15 = vset.pattern.permute.xlu0 0
  %16 = vperm.xlu0 %15, %v11
  %v17 = vpop.permute.xlu0 %16
  %20 = vset.pattern.permute.xlu0 0
  %21 = vperm.xlu0 %20, %v12
  %v22 = vpop.permute.xlu0 %21
  %v24 = vlaneseq
  %v25 = vshrl.u32 %v24, 7
  %v26 = vsub.s32 0, %v25
  %v27 = vrot.slane %v13, %v26
  %v28 = vmul.f32 %v17, %v27
  %v29 = vmul.f32 %v22, %v27
  %30 = vset.pattern.permute.xlu0 1
  %31 = vperm.xlu0 %30, %v11
  %v32 = vpop.permute.xlu0 %31
  %34 = vset.pattern.permute.xlu0 1
  %35 = vperm.xlu0 %34, %v12
  %v36 = vpop.permute.xlu0 %35
  %v38 = vlaneseq
  %v39 = vshrl.u32 %v38, 7
  %v40 = vsub.s32 1, %v39
  %v41 = vrot.slane %v13, %v40
  %v42 = vmul.f32 %v32, %v41
  %v43 = vmul.f32 %v36, %v41
  %v44 = vadd.f32 %v28, %v42
  %v45 = vadd.f32 %v29, %v43
  %v46 = vlaneseq
  %v47 = vshrl.u32 %v46, 7
  %v48 = vadd.s32 %v47, 8
  %v49 = vlaneseq
  %v50 = vand.u32 %v49, 127
  %v51 = vshra.s32 %v47, 3
  %v52 = vshra.s32 %v48, 3
  %v53 = vshra.s32 %v50, 3
  %vm54 = vcmp.eq.s32.totalorder %v51, %v53
  %vm55 = vcmp.eq.s32.totalorder %v52, %v53
  %vm56 = vcmp.le.s32.totalorder %v50, %v47
  %vm57 = vcmp.le.s32.totalorder %v50, %v48
  %vm58 = vmand %vm54, %vm56
  %vm59 = vmand %vm55, %vm57
  %v60 = vsel %vm58, 0.0, -1e+30
  %v61 = vsel %vm59, 0.0, -1e+30
  %vm62 = vcmask 15360
  %v64 = vsel %vm62, %v44, 0
  %v67 = vsel %vm62, %v45, 0
  %v69 = vsel %vm62, %v11, 0
  %v71 = vsel %vm62, %v12, 0
  %73 = vmatprep.subr.mxu0 0.0
  %74 = vmatpush1.xpose.msra.mxu0 %v69
  %75 = vmatprep.subr.mxu0 0.0
  %76 = vmatpush1.xpose.msra.mxu0 %v71
  %77 = vmatprep.subr.mxu0 0.0
  %78 = vmatpush1.xpose.msra.mxu0 0.0
  %79 = vmatprep.subr.mxu0 0.0
  %80 = vmatpush1.xpose.msra.mxu0 0.0
  %81 = vmatprep.subr.mxu0 0.0
  %82 = vmatpush1.xpose.msra.mxu0 0.0
  %83 = vmatprep.subr.mxu0 0.0
  %84 = vmatpush1.xpose.msra.mxu0 0.0
  %85 = vmatprep.subr.mxu0 0.0
  %86 = vmatpush1.xpose.msra.mxu0 0.0
  %87 = vmatprep.subr.mxu0 0.0
  %88 = vmatpush1.xpose.msra.mxu0 0.0
  %89 = vmatprep.subr.mxu0 0.0
  %90 = vmatpush1.xpose.msra.mxu0 0.0
  %91 = vmatprep.subr.mxu0 0.0
  %92 = vmatpush1.xpose.msra.mxu0 0.0
  %93 = vmatprep.subr.mxu0 0.0
  %94 = vmatpush1.xpose.msra.mxu0 0.0
  %95 = vmatprep.subr.mxu0 0.0
  %96 = vmatpush1.xpose.msra.mxu0 0.0
  %97 = vmatprep.subr.mxu0 0.0
  %98 = vmatpush1.xpose.msra.mxu0 0.0
  %99 = vmatprep.subr.mxu0 0.0
  %100 = vmatpush1.xpose.msra.mxu0 0.0
  %101 = vmatprep.subr.mxu0 0.0
  %102 = vmatpush1.xpose.msra.mxu0 0.0
  %103 = vmatprep.subr.mxu0 0.0
  %104 = vmatpush1.xpose.msra.mxu0 0.0
  %105 = vmatprep.subr.mxu0 0.0
  %106 = vmatpush1.xpose.msra.mxu0 0.0
  %107 = vmatprep.subr.mxu0 0.0
  %108 = vmatpush1.xpose.msra.mxu0 0.0
  %109 = vmatprep.subr.mxu0 0.0
  %110 = vmatpush1.xpose.msra.mxu0 0.0
  %111 = vmatprep.subr.mxu0 0.0
  %112 = vmatpush1.xpose.msra.mxu0 0.0
  %113 = vmatprep.subr.mxu0 0.0
  %114 = vmatpush1.xpose.msra.mxu0 0.0
  %115 = vmatprep.subr.mxu0 0.0
  %116 = vmatpush1.xpose.msra.mxu0 0.0
  %117 = vmatprep.subr.mxu0 0.0
  %118 = vmatpush1.xpose.msra.mxu0 0.0
  %119 = vmatprep.subr.mxu0 0.0
  %120 = vmatpush1.xpose.msra.mxu0 0.0
  %121 = vmatprep.subr.mxu0 0.0
  %122 = vmatpush1.xpose.msra.mxu0 0.0
  %123 = vmatprep.subr.mxu0 0.0
  %124 = vmatpush1.xpose.msra.mxu0 0.0
  %125 = vmatprep.subr.mxu0 0.0
  %126 = vmatpush1.xpose.msra.mxu0 0.0
  %127 = vmatprep.subr.mxu0 0.0
  %128 = vmatpush1.xpose.msra.mxu0 0.0
  %129 = vmatprep.subr.mxu0 0.0
  %130 = vmatpush1.xpose.msra.mxu0 0.0
  %131 = vmatprep.subr.mxu0 0.0
  %132 = vmatpush1.xpose.msra.mxu0 0.0
  %133 = vmatprep.subr.mxu0 0.0
  %134 = vmatpush1.xpose.msra.mxu0 0.0
  %135 = vmatprep.subr.mxu0 0.0
  %136 = vmatpush1.xpose.msra.mxu0 0.0
  %137 = vmatprep.mubr.f32.mxu0 0.0
  %138 = vmatmul.mubr.f32.gmra.mrb[0].mxu0 %v64
  %v139 = vpop.f32.mrb[0].mxu0
  %v140 = vadd.f32 %v60, %v139
  %v141 = vpop.f32.mrb[0].mxu0
  %142 = vmatprep.mubr.f32.mxu0 0.0
  %143 = vmatmul.mubr.f32.gmra.mrb[0].mxu0 %v67
  %v144 = vpop.f32.mrb[0].mxu0
  %v145 = vadd.f32 %v61, %v144
  %v146 = vpop.f32.mrb[0].mxu0
  %147 = vdwg.mxu0
  %vm148 = vcmask 130048
  %v149 = vsel %vm148, %v140, -inf
  %150 = vmax.xlane.f32.xlu0 %v149
  %v151 = vpop.xlane.xlu0 %150
  %v152 = vsel %vm148, %v145, -inf
  %153 = vmax.xlane.f32.xlu0 %v152
  %v154 = vpop.xlane.xlu0 %153
  %v155 = vsub.f32 %v140, %v151
  %v156 = vsub.f32 %v145, %v154
  %v157 = vmul.f32 %v155, 1.442695
  %v158 = vpow.pop %v157
  %v159 = vmul.f32 %v156, 1.442695
  %v160 = vpow.pop %v159
  %v161 = vsel %vm148, %v158, 0.0
  %162 = vadd.xlane.f32.xlu0 %v161
  %v163 = vpop.xlane.xlu0 %162
  %v164 = vsel %vm148, %v160, 0.0
  %165 = vadd.xlane.f32.xlu0 %v164
  %v166 = vpop.xlane.xlu0 %165
  %v167 = vrcp.pop %v163
  %v168 = vmul.f32 %v158, %v167
  %v169 = vrcp.pop %v166
  %v170 = vmul.f32 %v160, %v169
  %171 = vrot.lane.b32.xlu0 %v44, 126
  %v172 = vpop.permute.xlu0 %171
  %173 = vrot.lane.b32.xlu0 %v45, 126
  %v174 = vpop.permute.xlu0 %173
  %v178 = vsel %vm148, %v168, 0
  %v181 = vsel %vm148, %v170, 0
  %183 = vmatprep.subr.mxu0 0.0
  %184 = vmatpush1.msra.mxu0 %v172
  %185 = vmatprep.subr.mxu0 0.0
  %186 = vmatpush1.msra.mxu0 %v174
  %187 = vmatprep.subr.mxu0 0.0
  %188 = vmatpush1.msra.mxu0 0.0
  %189 = vmatprep.subr.mxu0 0.0
  %190 = vmatpush1.msra.mxu0 0.0
  %191 = vmatprep.subr.mxu0 0.0
  %192 = vmatpush1.msra.mxu0 0.0
  %193 = vmatprep.subr.mxu0 0.0
  %194 = vmatpush1.msra.mxu0 0.0
  %195 = vmatprep.subr.mxu0 0.0
  %196 = vmatpush1.msra.mxu0 0.0
  %197 = vmatprep.subr.mxu0 0.0
  %198 = vmatpush1.msra.mxu0 0.0
  %199 = vmatprep.subr.mxu0 0.0
  %200 = vmatpush1.msra.mxu0 0.0
  %201 = vmatprep.subr.mxu0 0.0
  %202 = vmatpush1.msra.mxu0 0.0
  %203 = vmatprep.subr.mxu0 0.0
  %204 = vmatpush1.msra.mxu0 0.0
  %205 = vmatprep.subr.mxu0 0.0
  %206 = vmatpush1.msra.mxu0 0.0
  %207 = vmatprep.subr.mxu0 0.0
  %208 = vmatpush1.msra.mxu0 0.0
  %209 = vmatprep.subr.mxu0 0.0
  %210 = vmatpush1.msra.mxu0 0.0
  %211 = vmatprep.subr.mxu0 0.0
  %212 = vmatpush1.msra.mxu0 0.0
  %213 = vmatprep.subr.mxu0 0.0
  %214 = vmatpush1.msra.mxu0 0.0
  %215 = vmatprep.subr.mxu0 0.0
  %216 = vmatpush1.msra.mxu0 0.0
  %217 = vmatprep.subr.mxu0 0.0
  %218 = vmatpush1.msra.mxu0 0.0
  %219 = vmatprep.subr.mxu0 0.0
  %220 = vmatpush1.msra.mxu0 0.0
  %221 = vmatprep.subr.mxu0 0.0
  %222 = vmatpush1.msra.mxu0 0.0
  %223 = vmatprep.subr.mxu0 0.0
  %224 = vmatpush1.msra.mxu0 0.0
  %225 = vmatprep.subr.mxu0 0.0
  %226 = vmatpush1.msra.mxu0 0.0
  %227 = vmatprep.subr.mxu0 0.0
  %228 = vmatpush1.msra.mxu0 0.0
  %229 = vmatprep.subr.mxu0 0.0
  %230 = vmatpush1.msra.mxu0 0.0
  %231 = vmatprep.subr.mxu0 0.0
  %232 = vmatpush1.msra.mxu0 0.0
  %233 = vmatprep.subr.mxu0 0.0
  %234 = vmatpush1.msra.mxu0 0.0
  %235 = vmatprep.subr.mxu0 0.0
  %236 = vmatpush1.msra.mxu0 0.0
  %237 = vmatprep.subr.mxu0 0.0
  %238 = vmatpush1.msra.mxu0 0.0
  %239 = vmatprep.subr.mxu0 0.0
  %240 = vmatpush1.msra.mxu0 0.0
  %241 = vmatprep.subr.mxu0 0.0
  %242 = vmatpush1.msra.mxu0 0.0
  %243 = vmatprep.subr.mxu0 0.0
  %244 = vmatpush1.msra.mxu0 0.0
  %245 = vmatprep.subr.mxu0 0.0
  %246 = vmatpush1.msra.mxu0 0.0
  %247 = vmatprep.mubr.f32.mxu0 0.0
  %248 = vmatmul.mubr.f32.gmra.mrb[0].mxu0 %v178
  %v249 = vpop.f32.mrb[0].mxu0
  %v250 = vadd.f32 0.0, %v249
  %v251 = vpop.f32.mrb[0].mxu0
  %252 = vmatprep.mubr.f32.mxu0 0.0
  %253 = vmatmul.mubr.f32.gmra.mrb[0].mxu0 %v181
  %v254 = vpop.f32.mrb[0].mxu0
  %v255 = vadd.f32 0.0, %v254
  %v256 = vpop.f32.mrb[0].mxu0
  %257 = vdwg.mxu0
  %v258 = vmul.f32 %v250, 10000.0
  %v259 = vmul.f32 %v255, 10000.0
  %v260 = vround.ne.pseudo %v258
  %v261 = vround.ne.pseudo %v259
  %v262 = vmul.f32 %v260, 0.0001
  %v263 = vmul.f32 %v261, 0.0001
  %vm264 = vcmask 23552
  %265 = vst.msk [vmem:[%s2] sm:$0xff] %vm264, %v262
  %266 = vst.msk [vmem:[%s2 + $0x8] sm:$0xff] %vm264, %v263
  // Predicated region
  $region10: #{_single_head_attention_impl.1} parent=0 // pred_check
    _
  $region11: #{_single_head_attention_impl.1} parent=0 // pred_check_branch
    %268 = sbr.rel (0) target = $region13
  $region12: #{_single_head_attention_impl.1} parent=0 // pred_region
    _
  $region13: #{_single_head_attention_impl.1} parent=0 // pred_fallthru
    _
  // Predicated region
  $region14: #{_single_head_attention_impl.1} parent=0 // pred_check
    _
  $region15: #{_single_head_attention_impl.1} parent=0 // pred_check_branch
    %270 = sbr.rel (0) target = $region17
  $region16: #{_single_head_attention_impl.1} parent=0 // pred_region
    _
  $region17: #{_single_head_attention_impl.1} parent=0 // pred_fallthru
    _

</llo_original>
